<compile_context>
chip_gen: v5e
topology: v5e:2x2
jax: 0.10.0
libtpu: 0.0.40
codegen_flags: <defaults>
</compile_context>

<pallas_src>
import functools

import jax
import jax.numpy as jnp
from jax.experimental import pallas as pl
from jax.experimental.pallas import tpu as pltpu


_EPS = 1e-12


def _round_up(n: int, m: int) -> int:
    return ((n + m - 1) // m) * m


def prepare_weight(weight, *, matmul_dtype=jnp.bfloat16):
    """F.normalize(weight, dim=0), hoisted out of the per-call hot path.

    Call once whenever the weights change and pass the result to
    cosine_classifier(..., weight_prenormalized=True) so the pallas_call is
    the only per-call HBM consumer.
    """
    w32 = weight.astype(jnp.float32)
    norm = jnp.sqrt(jnp.sum(w32 * w32, axis=0, keepdims=True))       # (1, D)
    w_n = w32 / jnp.maximum(norm, jnp.float32(_EPS))                 # (C, D)
    return w_n.astype(matmul_dtype)


def _cosine_kernel(x_ref, w_ref, o_ref, xs_ref, *,
                   scale: float, tn: int, w_resident: bool, cache_xs: bool):
    # x_ref : (tm, D) raw features (any float dtype; upcast to f32 here)
    # w_ref : (C_pad, D) resident normalized weight  OR  (tn, D) streamed tile
    # o_ref : (tm, tn) logits tile
    # xs_ref: (tm, D) scratch holding scale * normalized x in matmul dtype
    j = pl.program_id(1)

    def _compute_xs():
        x = x_ref[...].astype(jnp.float32)                           # (tm, D)
        # F.normalize(x, dim=-1) fused with the final * scale:
        #   x * scale / max(||x||, 1e-12) == x * scale * rsqrt(max(sumsq, 1e-24))
        sumsq = jnp.sum(x * x, axis=-1, keepdims=True)               # (tm, 1)
        inv = jax.lax.rsqrt(jnp.maximum(sumsq, jnp.float32(1e-24)))  # EUP
        xs_ref[...] = (x * (inv * jnp.float32(scale))).astype(xs_ref.dtype)

    if cache_xs:
        # Row normalization done once per batch tile (class axis "arbitrary"),
        # reused for every class tile j.
        @pl.when(j == 0)
        def _():
            _compute_xs()
    else:
        # Single batch tile / many class tiles: recompute (cheap) so the class
        # axis can stay "parallel" and both v7x TensorCores are used.
        _compute_xs()

    if w_resident:
        start = pl.multiple_of(j * tn, tn)
        w = w_ref[pl.ds(start, tn), :]                               # (tn, D)
    else:
        w = w_ref[...]                                               # (tn, D)

    # (tm, tn) = xs @ w.T on the MXU, f32 accumulation.
    logits = jax.lax.dot_general(
        xs_ref[...], w,
        dimension_numbers=(((1,), (1,)), ((), ())),
        preferred_element_type=jnp.float32,
    )
    o_ref[...] = logits.astype(o_ref.dtype)


def cosine_classifier(x, weight, scale=30.0, *, tm=256, tn=512,
                      use_bf16_matmul=True, weight_prenormalized=False,
                      out_dtype=None):
    """x: (B, feat_dim); weight: (num_classes, feat_dim) as in nn.Linear."""
    B, D = x.shape
    C, D2 = weight.shape
    assert D == D2

    matmul_dtype = jnp.bfloat16 if use_bf16_matmul else jnp.float32
    if weight_prenormalized:
        w_n = weight.astype(matmul_dtype)
    else:
        # Hoisted weight normalization (F.normalize(weight, dim=0)) in plain
        # XLA: the dim=0 norm needs every class row, so doing it here is what
        # makes class-dim tiling legal.  For hot loops, precompute once with
        # prepare_weight() instead.
        w_n = prepare_weight(weight, matmul_dtype=matmul_dtype)

    out_dtype = x.dtype if out_dtype is None else out_dtype

    x_bytes = jnp.dtype(x.dtype).itemsize
    w_bytes = jnp.dtype(matmul_dtype).itemsize
    out_bytes = jnp.dtype(out_dtype).itemsize

    # VMEM cap: ~85% of physical (64 MiB on v7x, 128 MiB on v5e/v6e).
    try:
        phys_vmem = int(pltpu.get_tpu_info().vmem_capacity_bytes)
    except Exception:
        phys_vmem = 64 * 1024 * 1024          # safe for every generation
    vmem_cap = int(phys_vmem * 0.85)

    # Tile sizes: batch tile multiple of 8 (sublanes), class tile multiple of
    # 128 (lane-dense, unmasked output stores).
    tm_eff = min(tm, _round_up(B, 8))
    tn_eff = min(tn, _round_up(C, 128))

    def need_bytes(tm_, tn_, w_rows_):
        return (2 * tm_ * D * x_bytes              # x tiles (double-buffered)
                + 2 * w_rows_ * D * w_bytes        # weight (resident or tiles)
                + 2 * tm_ * tn_ * out_bytes        # out tiles
                + tm_ * D * w_bytes)               # xs scratch

    # Auto-shrink tiles if the streamed-weight working set would not fit.
    # TODO(synk): prefer a K (feat_dim) grid axis + f32 accumulator over
    # shrinking once that path exists.
    while need_bytes(tm_eff, tn_eff, tn_eff) > vmem_cap and (tn_eff > 128 or tm_eff > 8):
        if tn_eff >= tm_eff and tn_eff > 128:
            tn_eff = max(128, _round_up(tn_eff // 2, 128))
        elif tm_eff > 8:
            tm_eff = max(8, _round_up(tm_eff // 2, 8))
        else:
            break

    # Pad to whole tiles (zero rows give 0 logits, padded classes are sliced
    # off; padding happens AFTER weight normalization so norms are exact).
    B_pad = _round_up(B, tm_eff)
    C_pad = _round_up(C, tn_eff)
    x_p = x if B_pad == B else jnp.pad(x, ((0, B_pad - B), (0, 0)))
    w_p = w_n if C_pad == C else jnp.pad(w_n, ((0, C_pad - C), (0, 0)))

    # Weight-resident mode: keep the whole normalized weight in VMEM (constant
    # index_map -> DMA'd once) so it is not re-streamed per batch tile.
    RESIDENT_BUDGET = 8 * 1024 * 1024           # counts both pipeline buffers
    w_resident = (2 * C_pad * D * w_bytes) <= RESIDENT_BUDGET
    w_rows = C_pad if w_resident else tn_eff
    need = need_bytes(tm_eff, tn_eff, w_rows)
    if w_resident and need > vmem_cap:          # fall back to streamed tiles
        w_resident = False
        w_rows = tn_eff
        need = need_bytes(tm_eff, tn_eff, w_rows)

    # need + ~25% headroom, floored at the default scoped limit, capped at
    # ~85% of physical VMEM for this generation.
    vmem_limit = int(min(max(int(need * 1.25), 32 * 1024 * 1024), vmem_cap))

    grid = (B_pad // tm_eff, C_pad // tn_eff)
    # Cache xs across class tiles unless that would serialize the only
    # multi-tile axis (1 batch tile, many class tiles) -> keep class parallel
    # so v7x can shard class tiles across both TensorCores.
    cache_xs = grid[0] > 1 or grid[1] == 1
    class_sem = "arbitrary" if (cache_xs and grid[1] > 1) else "parallel"

    if w_resident:
        w_spec = pl.BlockSpec((C_pad, D), lambda i, j: (0, 0))   # one DMA total
    else:
        w_spec = pl.BlockSpec((tn_eff, D), lambda i, j: (j, 0))  # streamed tile

    kernel = functools.partial(
        _cosine_kernel, scale=float(scale), tn=tn_eff,
        w_resident=w_resident, cache_xs=cache_xs)

    out = pl.pallas_call(
        kernel,
        out_shape=jax.ShapeDtypeStruct((B_pad, C_pad), out_dtype),
        grid_spec=pltpu.PrefetchScalarGridSpec(
            num_scalar_prefetch=0,
            grid=grid,
            in_specs=[
                pl.BlockSpec((tm_eff, D), lambda i, j: (i, 0)),  # x tile
                w_spec,                                          # normalized W
            ],
            out_specs=pl.BlockSpec((tm_eff, tn_eff), lambda i, j: (i, j)),
            scratch_shapes=[pltpu.VMEM((tm_eff, D), matmul_dtype)],
        ),
        compiler_params=pltpu.CompilerParams(
            dimension_semantics=("parallel", class_sem),
            vmem_limit_bytes=vmem_limit,
        ),
    )(x_p, w_p)

    return out[:B, :C]


def reference(x, weight, scale=30.0):
    x_n = x / jnp.maximum(jnp.linalg.norm(x, axis=-1, keepdims=True), 1e-12)
    w_n = weight / jnp.maximum(jnp.linalg.norm(weight, axis=0, keepdims=True), 1e-12)
    logits = jnp.dot(x_n, w_n.T, precision=jax.lax.Precision.HIGHEST)
    return logits * scale


if __name__ == "__main__":
    key = jax.random.PRNGKey(0)
    kx, kw, kx2, kw2 = jax.random.split(key, 4)
    scale = 30.0

    # 1) Small shapes consistent with the module: batch=8, feat_dim=32, classes=16.
    B, D, C = 8, 32, 16
    x = jax.random.normal(kx, (B, D), dtype=jnp.float32)
    # Deterministic xavier_uniform_ for weight of shape (num_classes, feat_dim).
    bound = (6.0 / (D + C)) ** 0.5
    weight = jax.random.uniform(kw, (C, D), dtype=jnp.float32,
                                minval=-bound, maxval=bound)
    ref1 = reference(x, weight, scale)

    # f32 MXU-operand path: tight semantic check.
    out_f32 = jax.block_until_ready(
        cosine_classifier(x, weight, scale, use_bf16_matmul=False))
    assert out_f32.shape == (B, C)
    assert jnp.allclose(out_f32, ref1, atol=1e-4, rtol=1e-4), "f32 small-shape mismatch"

    # Default path (bf16 MXU operands, norm math in f32): looser tol by design.
    out_bf = jax.block_until_ready(cosine_classifier(x, weight, scale))
    assert out_bf.shape == (B, C)
    assert jnp.allclose(out_bf, ref1, atol=0.5, rtol=5e-2), "bf16 small-shape mismatch"

    # 2) Multi-tile grid with padding on both the batch and class axes
    #    (exercises resident-weight path, class-tile slicing and xs caching).
    B2, D2, C2 = 200, 96, 300
    x2 = jax.random.normal(kx2, (B2, D2), dtype=jnp.float32)
    bound2 = (6.0 / (D2 + C2)) ** 0.5
    w2 = jax.random.uniform(kw2, (C2, D2), dtype=jnp.float32,
                            minval=-bound2, maxval=bound2)
    ref2 = reference(x2, w2, scale)

    out2_f32 = jax.block_until_ready(
        cosine_classifier(x2, w2, scale, tm=128, tn=128, use_bf16_matmul=False))
    assert out2_f32.shape == (B2, C2)
    assert jnp.allclose(out2_f32, ref2, atol=1e-3, rtol=1e-3), "f32 tiled mismatch"

    out2_bf = jax.block_until_ready(cosine_classifier(x2, w2, scale))
    assert jnp.allclose(out2_bf, ref2, atol=0.5, rtol=5e-2), "bf16 tiled mismatch"

    # 3) Pre-normalized weight fast path (normalization hoisted out of hot loop).
    w2_n = prepare_weight(w2)
    out3 = jax.block_until_ready(
        cosine_classifier(x2, w2_n, scale, weight_prenormalized=True))
    assert jnp.allclose(out3, ref2, atol=0.5, rtol=5e-2), "prenormalized-weight mismatch"

    print("KERNEL_OK")
</pallas_src>

<mosaic_0001>
module attributes {stable_mosaic.version = 11 : i64} {
  func.func @_cosine_kernel(%arg0: i32, %arg1: i32, %arg2: memref<8x32xf32, #tpu.memory_space<vmem>>, %arg3: memref<128x32xf32, #tpu.memory_space<vmem>>, %arg4: memref<8x128xf32, #tpu.memory_space<vmem>>, %arg5: memref<8x32xf32, #tpu.memory_space<vmem>>) attributes {dimension_semantics = [#tpu.dimension_semantics<parallel>, #tpu.dimension_semantics<parallel>], iteration_bounds = array<i64: 1, 1>, scalar_prefetch = 0 : i64, scratch_operands = 1 : i64, tpu.core_type = #tpu.core_type<tc>, window_params = [{transform_indices = @transform_0, window_bounds = array<i64: 8, 32>}, {pipeline_mode = #tpu.pipeline_mode<synchronous>, transform_indices = @transform_1, window_bounds = array<i64: 128, 32>}, {transform_indices = @transform_2, window_bounds = array<i64: 8, 128>}]} {
    %c0_i32 = arith.constant 0 : i32
    %0 = arith.cmpi eq, %arg1, %c0_i32 : i32
    %1 = arith.extui %0 : i1 to i32
    %c0_i32_0 = arith.constant 0 : i32
    %2 = arith.cmpi ne, %1, %c0_i32_0 : i32
    scf.if %2 {
      %c0_5 = arith.constant 0 : index
      %c0_6 = arith.constant 0 : index
      %10 = vector.load %arg2[%c0_5, %c0_6] : memref<8x32xf32, #tpu.memory_space<vmem>>, vector<8x32xf32>
      %11 = arith.mulf %10, %10 : vector<8x32xf32>
      %cst_7 = arith.constant dense<0.000000e+00> : vector<8xf32>
      %12 = vector.multi_reduction <add>, %11, %cst_7 [1] : vector<8x32xf32> to vector<8xf32>
      %13 = vector.shape_cast %12 : vector<8xf32> to vector<8x1xf32>
      %cst_8 = arith.constant 1.000000e-24 : f32
      %14 = vector.broadcast %cst_8 : f32 to vector<8x1xf32>
      %15 = arith.maximumf %13, %14 : vector<8x1xf32>
      %16 = math.rsqrt %15 : vector<8x1xf32>
      %cst_9 = arith.constant 3.000000e+01 : f32
      %17 = vector.broadcast %cst_9 : f32 to vector<8x1xf32>
      %18 = arith.mulf %16, %17 : vector<8x1xf32>
      %19 = vector.broadcast %18 : vector<8x1xf32> to vector<8x32xf32>
      %20 = arith.mulf %10, %19 : vector<8x32xf32>
      %c0_10 = arith.constant 0 : index
      %c0_11 = arith.constant 0 : index
      %21 = vector.load %arg5[%c0_10, %c0_11] : memref<8x32xf32, #tpu.memory_space<vmem>>, vector<8x32xf32>
      tpu.vector_store %arg5[%c0_10, %c0_11], %20 {strides = array<i32>} : memref<8x32xf32, #tpu.memory_space<vmem>>, vector<8x32xf32>,
    } else {
    }
    %c128_i32 = arith.constant 128 : i32
    %3 = arith.muli %arg1, %c128_i32 : i32
    %4 = tpu.assume_multiple %3, 128 : i32
    %5 = arith.index_cast %4 : i32 to index
    %c0 = arith.constant 0 : index
    %6 = vector.load %arg3[%5, %c0] : memref<128x32xf32, #tpu.memory_space<vmem>>, vector<128x32xf32>
    %c0_1 = arith.constant 0 : index
    %c0_2 = arith.constant 0 : index
    %7 = vector.load %arg5[%c0_1, %c0_2] : memref<8x32xf32, #tpu.memory_space<vmem>>, vector<8x32xf32>
    %cst = arith.constant dense<0.000000e+00> : vector<8x128xf32>
    %8 = tpu.matmul %7, %6, %cst {dimension_numbers = #tpu.dot_dimension_numbers<[1], [1], [0], [0], [0, 0, 1, 0], [], []>} : vector<8x32xf32>, vector<128x32xf32>, vector<8x128xf32> -> vector<8x128xf32>
    %c0_3 = arith.constant 0 : index
    %c0_4 = arith.constant 0 : index
    %9 = vector.load %arg4[%c0_3, %c0_4] : memref<8x128xf32, #tpu.memory_space<vmem>>, vector<8x128xf32>
    tpu.vector_store %arg4[%c0_3, %c0_4], %8 {strides = array<i32>} : memref<8x128xf32, #tpu.memory_space<vmem>>, vector<8x128xf32>,
    return
  }
  func.func @transform_0(%arg0: i32, %arg1: i32) -> (i32, i32) {
    %c0_i32 = arith.constant 0 : i32
    %c0_i32_0 = arith.constant 0 : i32
    return %arg0, %c0_i32 : i32, i32
  }
  func.func @transform_1(%arg0: i32, %arg1: i32) -> (i32, i32) {
    %c0_i32 = arith.constant 0 : i32
    %c0_i32_0 = arith.constant 0 : i32
    %c0_i32_1 = arith.constant 0 : i32
    return %c0_i32, %c0_i32_0 : i32, i32
  }
  func.func @transform_2(%arg0: i32, %arg1: i32) -> (i32, i32) {
    %c0_i32 = arith.constant 0 : i32
    return %arg0, %arg1 : i32, i32
  }
}

</mosaic_0001>

<llo_original>
// kernel: tpu_custom_call.1
$region0: #{tpu_custom_call.1}
  #allocation0 [shape = 'u32[]', space=smem, size = 0x4, offset = 0x4, fixed_abs, tag = 'smem constant byte address 0x4 - core index']
  #allocation1 [shape = 'u32[72,128]{1,0:T(1,128)}', space=vmem, size = 0x9000, scoped, tag = 'internal scratch']
  #allocation2 [shape = 'f32[8,32]{1,0:T(8,128)}', space=vmem, size = 0x1000, scoped, tag = 'scratch operand']
  %s0 = inlined_call_operand.vmem [shape: f32[8,32], index: 0, kind: input, shape index: {}]
  %s1 = inlined_call_operand.vmem [shape: f32[128,32], index: 1, kind: input, shape index: {}]
  %s2 = inlined_call_operand.hbm [shape: f32[8,128], index: 2, kind: output, shape index: {}]
  %s3 = sld [smem:[#allocation0]]
  $region22: #{tpu_custom_call.1} parent=0
    _
  %s5 = ssub.s32 1, %s3
  %s6 = scalar_select 0, %s5, %s3
  $region1: #{tpu_custom_call.1} parent=0
    #allocation3 [shape = 'u8[4096]{0}', space=vmem, size = 0x1000, scoped, tag = 'output window, operand 0, single buffered']
    #allocation4 [shape = 's32[1]{0}', space=sflag, size = 0x4, scoped, tag = 'scoped memory for tpu_custom_call.1']
    %7 = vsyncpa [#allocation4], 0
    // Predicated region
    $region2: #{tpu_custom_call.1} parent=1 // pred_check
      _
    $region3: #{tpu_custom_call.1} parent=1 // pred_check_branch
      %9 = sbr.rel (0) target = $region5
    $region4: #{tpu_custom_call.1} parent=1 // pred_region
      _
    $region5: #{tpu_custom_call.1} parent=1 // pred_fallthru
      _
    // Predicated region
    $region6: #{tpu_custom_call.1} parent=1 // pred_check
      _
    $region7: #{tpu_custom_call.1} parent=1 // pred_check_branch
      %11 = sbr.rel (0) target = $region9
    $region8: #{tpu_custom_call.1} parent=1 // pred_region
      _
    $region9: #{tpu_custom_call.1} parent=1 // pred_fallthru
      _
    %p12 = scmp.eq.s32.totalorder 0, 0
    // Predicated region
    $region10: #{tpu_custom_call.1} parent=1 // pred_check
      %p13 = pneg %p12
    $region11: #{tpu_custom_call.1} parent=1 // pred_check_branch
      %15 = sbr.rel (%p13) target = $region13
    $region12: #{tpu_custom_call.1} parent=1 // pred_region
      %v16 = vld [vmem:[%s0] sm:$0xff]
      %v17 = vmul.f32 %v16, %v16
      %vm18 = vcmask 261120
      %v19 = vsel %vm18, %v17, 0.0
      %20 = vadd.xlane.f32.xlu0 %v19
      %v21 = vpop.xlane.xlu0 %20
      %v22 = vmax.f32 %v21, 1e-24
      %v23 = vrsqrt.pop %v22
      %v24 = vmul.f32 %v23, %v22
      %v25 = vmul.f32 %v24, %v23
      %v26 = vmul.f32 0.5, %v25
      %v27 = vsub.f32 1.5, %v26
      %v28 = vmul.f32 %v23, %v27
      %vm29 = vweird.f32 %v22
      %vm30 = vweird.f32 %v23
      %vm31 = vmor %vm29, %vm30
      %v32 = vsel %vm31, %v23, %v28
      %v33 = vmul.f32 %v32, 30.0
      %v34 = vmul.f32 %v16, %v33
      %35 = vst.msk [vmem:[#allocation2] sm:$0xff] %vm18, %v34
    $region13: #{tpu_custom_call.1} parent=1 // pred_fallthru
      _
    %s36 = smul.u32 0, 128
    %s37 = scalar_lea.vmem %s1, %s36
    %v38 = vld [vmem:[%s37] sm:$0xff]
    %v39 = vld [vmem:[%s37 + $0x8] sm:$0xff]
    %v40 = vld [vmem:[%s37 + $0x10] sm:$0xff]
    %v41 = vld [vmem:[%s37 + $0x18] sm:$0xff]
    %v42 = vld [vmem:[%s37 + $0x20] sm:$0xff]
    %v43 = vld [vmem:[%s37 + $0x28] sm:$0xff]
    %v44 = vld [vmem:[%s37 + $0x30] sm:$0xff]
    %v45 = vld [vmem:[%s37 + $0x38] sm:$0xff]
    %v46 = vld [vmem:[%s37 + $0x40] sm:$0xff]
    %v47 = vld [vmem:[%s37 + $0x48] sm:$0xff]
    %v48 = vld [vmem:[%s37 + $0x50] sm:$0xff]
    %v49 = vld [vmem:[%s37 + $0x58] sm:$0xff]
    %v50 = vld [vmem:[%s37 + $0x60] sm:$0xff]
    %v51 = vld [vmem:[%s37 + $0x68] sm:$0xff]
    %v52 = vld [vmem:[%s37 + $0x70] sm:$0xff]
    %v53 = vld [vmem:[%s37 + $0x78] sm:$0xff]
    %v54 = vld [vmem:[#allocation2] sm:$0xff]
    %vm55 = vcmask 261120
    %v57 = vsel %vm55, %v54, 0
    %v60 = vsel %vm55, %v38, 0
    %v63 = vsel %vm55, %v39, 0
    %v66 = vsel %vm55, %v40, 0
    %v69 = vsel %vm55, %v41, 0
    %v72 = vsel %vm55, %v42, 0
    %v75 = vsel %vm55, %v43, 0
    %v78 = vsel %vm55, %v44, 0
    %v81 = vsel %vm55, %v45, 0
    %v84 = vsel %vm55, %v46, 0
    %v87 = vsel %vm55, %v47, 0
    %v90 = vsel %vm55, %v48, 0
    %v93 = vsel %vm55, %v49, 0
    %v96 = vsel %vm55, %v50, 0
    %v99 = vsel %vm55, %v51, 0
    %v102 = vsel %vm55, %v52, 0
    %v105 = vsel %vm55, %v53, 0
    %107 = vmatpush.xpose.msra.mxu0 %v105
    %108 = vmatpush.xpose.msra.mxu0 %v102
    %109 = vmatpush.xpose.msra.mxu0 %v99
    %110 = vmatpush.xpose.msra.mxu0 %v96
    %111 = vmatpush.xpose.msra.mxu0 %v93
    %112 = vmatpush.xpose.msra.mxu0 %v90
    %113 = vmatpush.xpose.msra.mxu0 %v87
    %114 = vmatpush.xpose.msra.mxu0 %v84
    %115 = vmatpush.xpose.msra.mxu0 %v81
    %116 = vmatpush.xpose.msra.mxu0 %v78
    %117 = vmatpush.xpose.msra.mxu0 %v75
    %118 = vmatpush.xpose.msra.mxu0 %v72
    %119 = vmatpush.xpose.msra.mxu0 %v69
    %120 = vmatpush.xpose.msra.mxu0 %v66
    %121 = vmatpush.xpose.msra.mxu0 %v63
    %122 = vmatpush.xpose.msra.mxu0 %v60
    %123 = vmatmul.f32.gmra.mxu0 %v57
    %v124 = vpop.f32.mrf.mxu0
    %v125 = vadd.f32 0.0, %v124
    %126 = vdwg.mxu0
    %127 = vst [vmem:[#allocation3] sm:$0xff] %v125
    // Predicated region
    $region14: #{tpu_custom_call.1} parent=1 // pred_check
      _
    $region15: #{tpu_custom_call.1} parent=1 // pred_check_branch
      %129 = sbr.rel (0) target = $region17
    $region16: #{tpu_custom_call.1} parent=1 // pred_region
      %131 = vsyncadd [#allocation4], 0
      %s133 = sshll.u32 [#allocation3], 4
      %s134 = int_to_ptr.vmem [resolvable:$true] %s133
      %s135 = sshll.u32 %s2, 4
      %s136 = int_to_ptr.hbm [resolvable:$true] %s135
      %138 = dma.vmem_to_hbm [thread:$0]  %s134, 128, %s136, [#allocation4]
    $region17: #{tpu_custom_call.1} parent=1 // pred_fallthru
      _
    // Predicated region
    $region18: #{tpu_custom_call.1} parent=1 // pred_check
      _
    $region19: #{tpu_custom_call.1} parent=1 // pred_check_branch
      %140 = sbr.rel (0) target = $region21
    $region20: #{tpu_custom_call.1} parent=1 // pred_region
      %142 = dma.done [#allocation4], 128
    $region21: #{tpu_custom_call.1} parent=1 // pred_fallthru
      _
    %143 = vsyncpa [#allocation4], 1

</llo_original>
